<compile_context>
chip_gen: v7x
topology: tpu7x:2x2x1
jax: 0.10.0
libtpu: 0.0.40
codegen_flags: <defaults>
</compile_context>

<pallas_src>
import functools

import jax
import jax.numpy as jnp
from jax.experimental import pallas as pl
from jax.experimental.pallas import tpu as pltpu


def _double_conv_kernel(x_ref, w1_ref, w2_ref, mask_ref, o_ref, *, W):
    # x_ref   : (1, Cin, L)         channels on sublanes, (img, h, w) on lanes
    # w1_ref  : (Cout, 9*Cin + 1)   tap-folded conv1 weight, bias = last column
    # w2_ref  : (Cout, 9*Cout + 1)  tap-folded conv2 weight, bias = last column
    # mask_ref: (9, L)              per-tap zero-padding / image-boundary mask
    # o_ref   : (1, Cout, L)        lane-dense output
    L = x_ref.shape[-1]
    offsets = [dh * W + dw for dh in (-1, 0, 1) for dw in (-1, 0, 1)]
    mask = mask_ref[...]                                 # (9, L) f32 {0,1}
    ones_row = jnp.ones((1, L), jnp.float32)

    def conv3x3_lrelu(a, w_ref):
        # a: (C, L) f32 -> (Cout, L) f32.
        # Stack the 9 rolled+masked patches (plus a ones row for the bias)
        # on the contraction axis and do a single MXU matmul with
        # K = 9*C + 1, instead of 9 near-empty K=C pushes + 8 VALU adds.
        rows = []
        for k, d in enumerate(offsets):
            shifted = pltpu.roll(a, shift=(-d) % L, axis=1) if d else a
            rows.append(shifted * mask[k:k + 1, :])      # zero padding + no wrap
        rows.append(ones_row)                            # bias row
        rhs = jnp.concatenate(rows, axis=0)              # (9*C + 1, L)
        y = jnp.dot(w_ref[...], rhs, preferred_element_type=jnp.float32)
        return jnp.maximum(y, 0.2 * y)                   # LeakyReLU(0.2)

    x = x_ref[0].astype(jnp.float32)                     # (Cin,  L)
    y1 = conv3x3_lrelu(x, w1_ref)                        # (Cout, L)
    y2 = conv3x3_lrelu(y1, w2_ref)                       # (Cout, L)
    o_ref[0] = y2.astype(o_ref.dtype)


def _pick_batch_fold(N, HW, max_lanes=2048):
    """Images folded onto the lane axis per grid step.

    Keeps >= 2 grid steps whenever N >= 2 (megacore on v7x) and bounds the
    lane width of one block."""
    nt = 1
    for cand in range(1, N + 1):
        if N % cand:
            continue
        if N >= 2 and N // cand < 2:
            continue
        if cand * HW > max_lanes:
            continue
        nt = cand
    return nt


def double_conv2d(x_nchw, w1, b1, w2, b2):
    """x_nchw: (N, Cin, H, W); w1: (Cout, Cin, 3, 3); b1: (Cout,);
    w2: (Cout, Cout, 3, 3); b2: (Cout,).  Returns (N, Cout, H, W)."""
    N, Cin, H, W = x_nchw.shape
    Cout = w1.shape[0]
    HW = H * W

    nt = _pick_batch_fold(N, HW)
    G = N // nt
    L = nt * HW

    # Fold nt images onto the lane axis per grid step (channels stay on
    # sublanes).  For nt == 1 these transposes/reshapes are free.
    x_flat = x_nchw.reshape(G, nt, Cin, HW).transpose(0, 2, 1, 3).reshape(G, Cin, L)

    # Tap-folded weights: column block k = kh*3 + kw holds w[:, :, kh, kw];
    # bias appended as one extra column (matched by the ones row in the RHS).
    w1_fold = jnp.concatenate(
        [jnp.transpose(w1, (0, 2, 3, 1)).reshape(Cout, 9 * Cin),
         b1.reshape(Cout, 1)], axis=1)                   # (Cout, 9*Cin + 1)
    w2_fold = jnp.concatenate(
        [jnp.transpose(w2, (0, 2, 3, 1)).reshape(Cout, 9 * Cout),
         b2.reshape(Cout, 1)], axis=1)                   # (Cout, 9*Cout + 1)

    # Per-tap validity mask for the lane-rolled patches: equivalent to the
    # conv's zero padding, and (via % H) also masks cross-image wrap when
    # several images share the lane axis.
    pos = jnp.arange(L, dtype=jnp.int32)
    wcol = pos % W
    hrow = (pos // W) % H
    masks = []
    for dh in (-1, 0, 1):
        for dw in (-1, 0, 1):
            ok = ((wcol + dw >= 0) & (wcol + dw < W) &
                  (hrow + dh >= 0) & (hrow + dh < H))
            masks.append(ok)
    mask = jnp.stack(masks).astype(jnp.float32)          # (9, L)

    kernel = functools.partial(_double_conv_kernel, W=W)

    out_flat = pl.pallas_call(
        kernel,
        out_shape=jax.ShapeDtypeStruct((G, Cout, L), x_nchw.dtype),
        grid_spec=pltpu.PrefetchScalarGridSpec(
            num_scalar_prefetch=0,
            grid=(G,),
            in_specs=[
                pl.BlockSpec((1, Cin, L), lambda g: (g, 0, 0)),
                pl.BlockSpec((Cout, 9 * Cin + 1), lambda g: (0, 0)),
                pl.BlockSpec((Cout, 9 * Cout + 1), lambda g: (0, 0)),
                pl.BlockSpec((9, L), lambda g: (0, 0)),
            ],
            out_specs=pl.BlockSpec((1, Cout, L), lambda g: (g, 0, 0)),
        ),
        compiler_params=pltpu.CompilerParams(
            dimension_semantics=("parallel",),
            vmem_limit_bytes=32 * 1024 * 1024,
        ),
    )(x_flat, w1_fold, w2_fold, mask)

    # TODO(synk): at production H/W/C add a second "parallel" grid axis over H
    # row-tiles (2-row halo for the fused double conv) sized against v7x's
    # 64 MiB VMEM, and cast matmul operands to bf16 (f32 accumulate) once
    # Cin/Cout >= 64 (v6e/v7x MXU full rate); elementwise math stays f32.
    return (out_flat.reshape(G, Cout, nt, HW)
            .transpose(0, 2, 1, 3)
            .reshape(N, Cout, H, W))


def ref_forward(x_nchw, w1, b1, w2, b2):
    """Pure-JAX reference (matches torch.nn.Conv2d + LeakyReLU(0.2))."""
    def conv(x, w, b):
        y = jax.lax.conv_general_dilated(
            x, w, window_strides=(1, 1), padding=((1, 1), (1, 1)),
            dimension_numbers=("NCHW", "OIHW", "NCHW"))
        return y + b.reshape(1, -1, 1, 1)

    y = conv(x_nchw, w1, b1)
    y = jnp.where(y > 0, y, 0.2 * y)
    y = conv(y, w2, b2)
    y = jnp.where(y > 0, y, 0.2 * y)
    return y


if __name__ == "__main__":
    N, Cin, Cout, H, W = 2, 4, 8, 16, 16

    key = jax.random.PRNGKey(0)
    kx, k1, k2, k3, k4, kx2 = jax.random.split(key, 6)

    x = jax.random.normal(kx, (N, Cin, H, W), dtype=jnp.float32)
    # Shapes match nn.Conv2d(in, out, 3, padding=1).
    w1 = jax.random.normal(k1, (Cout, Cin, 3, 3), dtype=jnp.float32) * 0.1
    b1 = jax.random.normal(k2, (Cout,), dtype=jnp.float32) * 0.1
    w2 = jax.random.normal(k3, (Cout, Cout, 3, 3), dtype=jnp.float32) * 0.1
    b2 = jax.random.normal(k4, (Cout,), dtype=jnp.float32) * 0.1

    out = jax.block_until_ready(double_conv2d(x, w1, b1, w2, b2))
    ref = ref_forward(x, w1, b1, w2, b2)
    assert out.shape == (N, Cout, H, W), out.shape
    assert jnp.allclose(out, ref, atol=1e-4, rtol=1e-4), "mismatch vs reference (N=2)"

    # Extra check that exercises the batch-fold path (nt=2: two images share
    # the lane axis, cross-image wrap must be masked).
    x4 = jax.random.normal(kx2, (4, Cin, H, W), dtype=jnp.float32)
    out4 = jax.block_until_ready(double_conv2d(x4, w1, b1, w2, b2))
    ref4 = ref_forward(x4, w1, b1, w2, b2)
    assert jnp.allclose(out4, ref4, atol=1e-4, rtol=1e-4), "mismatch vs reference (N=4, folded)"

    print("KERNEL_OK")
</pallas_src>

<mosaic_0001>
module attributes {stable_mosaic.version = 11 : i64} {
  func.func @_double_conv_kernel(%arg0: i32, %arg1: memref<1x4x256xf32, #tpu.memory_space<vmem>>, %arg2: memref<8x37xf32, #tpu.memory_space<vmem>>, %arg3: memref<8x73xf32, #tpu.memory_space<vmem>>, %arg4: memref<9x256xf32, #tpu.memory_space<vmem>>, %arg5: memref<1x8x256xf32, #tpu.memory_space<vmem>>) attributes {dimension_semantics = [#tpu.dimension_semantics<parallel>], iteration_bounds = array<i64: 2>, scalar_prefetch = 0 : i64, scratch_operands = 0 : i64, tpu.core_type = #tpu.core_type<tc>, window_params = [{transform_indices = @transform_0, window_bounds = array<i64: 1, 4, 256>}, {pipeline_mode = #tpu.pipeline_mode<synchronous>, transform_indices = @transform_1, window_bounds = array<i64: 8, 37>}, {pipeline_mode = #tpu.pipeline_mode<synchronous>, transform_indices = @transform_2, window_bounds = array<i64: 8, 73>}, {pipeline_mode = #tpu.pipeline_mode<synchronous>, transform_indices = @transform_3, window_bounds = array<i64: 9, 256>}, {transform_indices = @transform_4, window_bounds = array<i64: 1, 8, 256>}]} {
    %c0 = arith.constant 0 : index
    %c0_0 = arith.constant 0 : index
    %0 = vector.load %arg4[%c0, %c0_0] : memref<9x256xf32, #tpu.memory_space<vmem>>, vector<9x256xf32>
    %cst = arith.constant 1.000000e+00 : f32
    %1 = vector.broadcast %cst : f32 to vector<1x256xf32>
    %c0_1 = arith.constant 0 : index
    %c0_2 = arith.constant 0 : index
    %c0_3 = arith.constant 0 : index
    %2 = vector.load %arg1[%c0_1, %c0_2, %c0_3] : memref<1x4x256xf32, #tpu.memory_space<vmem>>, vector<1x4x256xf32>
    %3 = vector.shape_cast %2 : vector<1x4x256xf32> to vector<4x256xf32>
    %c17_i32 = arith.constant 17 : i32
    %4 = tpu.dynamic_rotate %3 by %c17_i32 dim 1 : vector<4x256xf32>, i32 -> vector<4x256xf32>
    %5 = vector.extract_strided_slice %0 {offsets = [0, 0], sizes = [1, 256], strides = [1, 1]} : vector<9x256xf32> to vector<1x256xf32>
    %6 = vector.broadcast %5 : vector<1x256xf32> to vector<4x256xf32>
    %7 = arith.mulf %4, %6 : vector<4x256xf32>
    %c16_i32 = arith.constant 16 : i32
    %8 = tpu.dynamic_rotate %3 by %c16_i32 dim 1 : vector<4x256xf32>, i32 -> vector<4x256xf32>
    %9 = vector.extract_strided_slice %0 {offsets = [1, 0], sizes = [1, 256], strides = [1, 1]} : vector<9x256xf32> to vector<1x256xf32>
    %10 = vector.broadcast %9 : vector<1x256xf32> to vector<4x256xf32>
    %11 = arith.mulf %8, %10 : vector<4x256xf32>
    %c15_i32 = arith.constant 15 : i32
    %12 = tpu.dynamic_rotate %3 by %c15_i32 dim 1 : vector<4x256xf32>, i32 -> vector<4x256xf32>
    %13 = vector.extract_strided_slice %0 {offsets = [2, 0], sizes = [1, 256], strides = [1, 1]} : vector<9x256xf32> to vector<1x256xf32>
    %14 = vector.broadcast %13 : vector<1x256xf32> to vector<4x256xf32>
    %15 = arith.mulf %12, %14 : vector<4x256xf32>
    %c1_i32 = arith.constant 1 : i32
    %16 = tpu.dynamic_rotate %3 by %c1_i32 dim 1 : vector<4x256xf32>, i32 -> vector<4x256xf32>
    %17 = vector.extract_strided_slice %0 {offsets = [3, 0], sizes = [1, 256], strides = [1, 1]} : vector<9x256xf32> to vector<1x256xf32>
    %18 = vector.broadcast %17 : vector<1x256xf32> to vector<4x256xf32>
    %19 = arith.mulf %16, %18 : vector<4x256xf32>
    %20 = vector.extract_strided_slice %0 {offsets = [4, 0], sizes = [1, 256], strides = [1, 1]} : vector<9x256xf32> to vector<1x256xf32>
    %21 = vector.broadcast %20 : vector<1x256xf32> to vector<4x256xf32>
    %22 = arith.mulf %3, %21 : vector<4x256xf32>
    %c255_i32 = arith.constant 255 : i32
    %23 = tpu.dynamic_rotate %3 by %c255_i32 dim 1 : vector<4x256xf32>, i32 -> vector<4x256xf32>
    %24 = vector.extract_strided_slice %0 {offsets = [5, 0], sizes = [1, 256], strides = [1, 1]} : vector<9x256xf32> to vector<1x256xf32>
    %25 = vector.broadcast %24 : vector<1x256xf32> to vector<4x256xf32>
    %26 = arith.mulf %23, %25 : vector<4x256xf32>
    %c241_i32 = arith.constant 241 : i32
    %27 = tpu.dynamic_rotate %3 by %c241_i32 dim 1 : vector<4x256xf32>, i32 -> vector<4x256xf32>
    %28 = vector.extract_strided_slice %0 {offsets = [6, 0], sizes = [1, 256], strides = [1, 1]} : vector<9x256xf32> to vector<1x256xf32>
    %29 = vector.broadcast %28 : vector<1x256xf32> to vector<4x256xf32>
    %30 = arith.mulf %27, %29 : vector<4x256xf32>
    %c240_i32 = arith.constant 240 : i32
    %31 = tpu.dynamic_rotate %3 by %c240_i32 dim 1 : vector<4x256xf32>, i32 -> vector<4x256xf32>
    %32 = vector.extract_strided_slice %0 {offsets = [7, 0], sizes = [1, 256], strides = [1, 1]} : vector<9x256xf32> to vector<1x256xf32>
    %33 = vector.broadcast %32 : vector<1x256xf32> to vector<4x256xf32>
    %34 = arith.mulf %31, %33 : vector<4x256xf32>
    %c239_i32 = arith.constant 239 : i32
    %35 = tpu.dynamic_rotate %3 by %c239_i32 dim 1 : vector<4x256xf32>, i32 -> vector<4x256xf32>
    %36 = vector.extract_strided_slice %0 {offsets = [8, 0], sizes = [1, 256], strides = [1, 1]} : vector<9x256xf32> to vector<1x256xf32>
    %37 = vector.broadcast %36 : vector<1x256xf32> to vector<4x256xf32>
    %38 = arith.mulf %35, %37 : vector<4x256xf32>
    %39 = tpu.concatenate %7, %11, %15, %19, %22, %26, %30, %34, %38, %1 in 0 : vector<4x256xf32>, vector<4x256xf32>, vector<4x256xf32>, vector<4x256xf32>, vector<4x256xf32>, vector<4x256xf32>, vector<4x256xf32>, vector<4x256xf32>, vector<4x256xf32>, vector<1x256xf32> -> vector<37x256xf32>
    %c0_4 = arith.constant 0 : index
    %c0_5 = arith.constant 0 : index
    %40 = vector.load %arg2[%c0_4, %c0_5] : memref<8x37xf32, #tpu.memory_space<vmem>>, vector<8x37xf32>
    %cst_6 = arith.constant dense<0.000000e+00> : vector<8x256xf32>
    %41 = tpu.matmul %40, %39, %cst_6 {dimension_numbers = #tpu.dot_dimension_numbers<[1], [0], [0], [1], [0, 0, 1, 1], [], []>} : vector<8x37xf32>, vector<37x256xf32>, vector<8x256xf32> -> vector<8x256xf32>
    %cst_7 = arith.constant 2.000000e-01 : f32
    %42 = vector.broadcast %cst_7 : f32 to vector<8x256xf32>
    %43 = arith.mulf %42, %41 : vector<8x256xf32>
    %44 = arith.maximumf %41, %43 : vector<8x256xf32>
    %c17_i32_8 = arith.constant 17 : i32
    %45 = tpu.dynamic_rotate %44 by %c17_i32_8 dim 1 : vector<8x256xf32>, i32 -> vector<8x256xf32>
    %46 = vector.extract_strided_slice %0 {offsets = [0, 0], sizes = [1, 256], strides = [1, 1]} : vector<9x256xf32> to vector<1x256xf32>
    %47 = vector.broadcast %46 : vector<1x256xf32> to vector<8x256xf32>
    %48 = arith.mulf %45, %47 : vector<8x256xf32>
    %c16_i32_9 = arith.constant 16 : i32
    %49 = tpu.dynamic_rotate %44 by %c16_i32_9 dim 1 : vector<8x256xf32>, i32 -> vector<8x256xf32>
    %50 = vector.extract_strided_slice %0 {offsets = [1, 0], sizes = [1, 256], strides = [1, 1]} : vector<9x256xf32> to vector<1x256xf32>
    %51 = vector.broadcast %50 : vector<1x256xf32> to vector<8x256xf32>
    %52 = arith.mulf %49, %51 : vector<8x256xf32>
    %c15_i32_10 = arith.constant 15 : i32
    %53 = tpu.dynamic_rotate %44 by %c15_i32_10 dim 1 : vector<8x256xf32>, i32 -> vector<8x256xf32>
    %54 = vector.extract_strided_slice %0 {offsets = [2, 0], sizes = [1, 256], strides = [1, 1]} : vector<9x256xf32> to vector<1x256xf32>
    %55 = vector.broadcast %54 : vector<1x256xf32> to vector<8x256xf32>
    %56 = arith.mulf %53, %55 : vector<8x256xf32>
    %c1_i32_11 = arith.constant 1 : i32
    %57 = tpu.dynamic_rotate %44 by %c1_i32_11 dim 1 : vector<8x256xf32>, i32 -> vector<8x256xf32>
    %58 = vector.extract_strided_slice %0 {offsets = [3, 0], sizes = [1, 256], strides = [1, 1]} : vector<9x256xf32> to vector<1x256xf32>
    %59 = vector.broadcast %58 : vector<1x256xf32> to vector<8x256xf32>
    %60 = arith.mulf %57, %59 : vector<8x256xf32>
    %61 = vector.extract_strided_slice %0 {offsets = [4, 0], sizes = [1, 256], strides = [1, 1]} : vector<9x256xf32> to vector<1x256xf32>
    %62 = vector.broadcast %61 : vector<1x256xf32> to vector<8x256xf32>
    %63 = arith.mulf %44, %62 : vector<8x256xf32>
    %c255_i32_12 = arith.constant 255 : i32
    %64 = tpu.dynamic_rotate %44 by %c255_i32_12 dim 1 : vector<8x256xf32>, i32 -> vector<8x256xf32>
    %65 = vector.extract_strided_slice %0 {offsets = [5, 0], sizes = [1, 256], strides = [1, 1]} : vector<9x256xf32> to vector<1x256xf32>
    %66 = vector.broadcast %65 : vector<1x256xf32> to vector<8x256xf32>
    %67 = arith.mulf %64, %66 : vector<8x256xf32>
    %c241_i32_13 = arith.constant 241 : i32
    %68 = tpu.dynamic_rotate %44 by %c241_i32_13 dim 1 : vector<8x256xf32>, i32 -> vector<8x256xf32>
    %69 = vector.extract_strided_slice %0 {offsets = [6, 0], sizes = [1, 256], strides = [1, 1]} : vector<9x256xf32> to vector<1x256xf32>
    %70 = vector.broadcast %69 : vector<1x256xf32> to vector<8x256xf32>
    %71 = arith.mulf %68, %70 : vector<8x256xf32>
    %c240_i32_14 = arith.constant 240 : i32
    %72 = tpu.dynamic_rotate %44 by %c240_i32_14 dim 1 : vector<8x256xf32>, i32 -> vector<8x256xf32>
    %73 = vector.extract_strided_slice %0 {offsets = [7, 0], sizes = [1, 256], strides = [1, 1]} : vector<9x256xf32> to vector<1x256xf32>
    %74 = vector.broadcast %73 : vector<1x256xf32> to vector<8x256xf32>
    %75 = arith.mulf %72, %74 : vector<8x256xf32>
    %c239_i32_15 = arith.constant 239 : i32
    %76 = tpu.dynamic_rotate %44 by %c239_i32_15 dim 1 : vector<8x256xf32>, i32 -> vector<8x256xf32>
    %77 = vector.extract_strided_slice %0 {offsets = [8, 0], sizes = [1, 256], strides = [1, 1]} : vector<9x256xf32> to vector<1x256xf32>
    %78 = vector.broadcast %77 : vector<1x256xf32> to vector<8x256xf32>
    %79 = arith.mulf %76, %78 : vector<8x256xf32>
    %80 = tpu.concatenate %48, %52, %56, %60, %63, %67, %71, %75, %79, %1 in 0 : vector<8x256xf32>, vector<8x256xf32>, vector<8x256xf32>, vector<8x256xf32>, vector<8x256xf32>, vector<8x256xf32>, vector<8x256xf32>, vector<8x256xf32>, vector<8x256xf32>, vector<1x256xf32> -> vector<73x256xf32>
    %c0_16 = arith.constant 0 : index
    %c0_17 = arith.constant 0 : index
    %81 = vector.load %arg3[%c0_16, %c0_17] : memref<8x73xf32, #tpu.memory_space<vmem>>, vector<8x73xf32>
    %cst_18 = arith.constant dense<0.000000e+00> : vector<8x256xf32>
    %82 = tpu.matmul %81, %80, %cst_18 {dimension_numbers = #tpu.dot_dimension_numbers<[1], [0], [0], [1], [0, 0, 1, 1], [], []>} : vector<8x73xf32>, vector<73x256xf32>, vector<8x256xf32> -> vector<8x256xf32>
    %cst_19 = arith.constant 2.000000e-01 : f32
    %83 = vector.broadcast %cst_19 : f32 to vector<8x256xf32>
    %84 = arith.mulf %83, %82 : vector<8x256xf32>
    %85 = arith.maximumf %82, %84 : vector<8x256xf32>
    %c0_20 = arith.constant 0 : index
    %c0_21 = arith.constant 0 : index
    %c0_22 = arith.constant 0 : index
    %86 = vector.load %arg5[%c0_20, %c0_21, %c0_22] : memref<1x8x256xf32, #tpu.memory_space<vmem>>, vector<1x8x256xf32>
    %87 = vector.shape_cast %86 : vector<1x8x256xf32> to vector<8x256xf32>
    %88 = vector.shape_cast %85 : vector<8x256xf32> to vector<1x8x256xf32>
    tpu.vector_store %arg5[%c0_20, %c0_21, %c0_22], %88 {strides = array<i32>} : memref<1x8x256xf32, #tpu.memory_space<vmem>>, vector<1x8x256xf32>,
    return
  }
  func.func @transform_0(%arg0: i32) -> (i32, i32, i32) {
    %c0_i32 = arith.constant 0 : i32
    %c0_i32_0 = arith.constant 0 : i32
    %c0_i32_1 = arith.constant 0 : i32
    return %arg0, %c0_i32, %c0_i32_0 : i32, i32, i32
  }
  func.func @transform_1(%arg0: i32) -> (i32, i32) {
    %c0_i32 = arith.constant 0 : i32
    %c0_i32_0 = arith.constant 0 : i32
    %c0_i32_1 = arith.constant 0 : i32
    return %c0_i32, %c0_i32_0 : i32, i32
  }
  func.func @transform_2(%arg0: i32) -> (i32, i32) {
    %c0_i32 = arith.constant 0 : i32
    %c0_i32_0 = arith.constant 0 : i32
    %c0_i32_1 = arith.constant 0 : i32
    return %c0_i32, %c0_i32_0 : i32, i32
  }
  func.func @transform_3(%arg0: i32) -> (i32, i32) {
    %c0_i32 = arith.constant 0 : i32
    %c0_i32_0 = arith.constant 0 : i32
    %c0_i32_1 = arith.constant 0 : i32
    return %c0_i32, %c0_i32_0 : i32, i32
  }
  func.func @transform_4(%arg0: i32) -> (i32, i32, i32) {
    %c0_i32 = arith.constant 0 : i32
    %c0_i32_0 = arith.constant 0 : i32
    %c0_i32_1 = arith.constant 0 : i32
    return %arg0, %c0_i32, %c0_i32_0 : i32, i32, i32
  }
}

</mosaic_0001>

<llo_original>
// kernel: tpu_custom_call.1
$region0: #{tpu_custom_call.1}
  #allocation0 [shape = 'u32[]', space=smem, size = 0x4, offset = 0x4, fixed_abs, tag = 'smem constant byte address 0x4 - core index']
  #allocation1 [shape = 'u32[144,128]{1,0:T(1,128)}', space=vmem, size = 0x12000, scoped, tag = 'internal scratch']
  %s0 = inlined_call_operand.hbm [shape: f32[2,4,256], index: 0, kind: input, shape index: {}]
  %s1 = inlined_call_operand.hbm [shape: f32[8,37], index: 1, kind: input, shape index: {}]
  %s2 = inlined_call_operand.hbm [shape: f32[8,73], index: 2, kind: input, shape index: {}]
  %s3 = inlined_call_operand.hbm [shape: f32[9,256], index: 3, kind: input, shape index: {}]
  %s4 = inlined_call_operand.hbm [shape: f32[2,8,256], index: 4, kind: output, shape index: {}]
  %s5 = sld [smem:[#allocation0]]
  $region65: #{tpu_custom_call.1} parent=0
    _
  %s7 = ssub.s32 1, %s5
  %s8 = scalar_select 0, %s7, %s5
  $region1: #{tpu_custom_call.1} parent=0
    #allocation2 [shape = 'u8[8192]{0}', space=vmem, size = 0x2000, scoped, tag = 'input window, operand 0']
    #allocation3 [shape = 's32[2]{0}', space=sflag, size = 0x8, scoped, tag = 'scoped memory for tpu_custom_call.1']
    #allocation4 [shape = 's32[2]{0}', space=sflag, size = 0x8, scoped, tag = 'scoped memory for tpu_custom_call.1']
    #allocation5 [shape = 'u8[4096]{0}', space=vmem, size = 0x1000, scoped, tag = 'input window, operand 1, single buffered']
    #allocation6 [shape = 's32[1]{0}', space=sflag, size = 0x4, scoped, tag = 'scoped memory for tpu_custom_call.1']
    #allocation7 [shape = 'u8[4096]{0}', space=vmem, size = 0x1000, scoped, tag = 'input window, operand 2, single buffered']
    #allocation8 [shape = 'u8[16384]{0}', space=vmem, size = 0x4000, scoped, tag = 'input window, operand 3, single buffered']
    #allocation9 [shape = 's32[1]{0}', space=sflag, size = 0x4, scoped, tag = 'scoped memory for tpu_custom_call.1']
    #allocation10 [shape = 'u8[16384]{0}', space=vmem, size = 0x4000, scoped, tag = 'output window, operand 0']
    %9 = vsyncpa [#allocation3], 0
    %s10 = scalar_lea.sflag [#allocation3], 1
    %11 = vsyncpa %s10, 0
    %12 = vsyncpa [#allocation6], 0
    %13 = vsyncpa [#allocation9], 0
    %14 = vsyncpa [#allocation4], 0
    %s15 = scalar_lea.sflag [#allocation4], 1
    %16 = vsyncpa %s15, 0
    loop: start=0, step=1, limit=4
    $region2: #{tpu_custom_call.1} parent=1 // loop_pre_header
      _
    $region3: #{tpu_custom_call.1} parent=1 // loop_header
      %s18 = sphi 0, %s22
      %p19 = scmp.ge.s32.totalorder %s18, 4
      %s28 = sphi 0, %s30
      %s31 = sphi 0, %s28
      %s32 = sphi 0, %s31
      %s48 = sphi 0, %s32
      %s52 = sphi 0, %s52
      %s54 = sphi 0, %s52
      %s55 = sphi 0, %s54
      %s69 = sphi 0, %s55
      %s73 = sphi 0, %s73
      %s75 = sphi 0, %s73
      %s76 = sphi 0, %s75
      %s90 = sphi 0, %s76
      %s94 = sphi 0, %s94
      %s96 = sphi 0, %s94
      %s97 = sphi 0, %s96
      %s111 = sphi 0, %s97
      %s117 = sphi 0, %s119
      %s120 = sphi 0, %s117
      %s121 = sphi 0, %s120
      %s137 = sphi 0, %s121
    $region4: #{tpu_custom_call.1} parent=1 // loop_header_branch
      %21 = sbr.rel (%p19) target = $region8
    $region5: #{tpu_custom_call.1} parent=1 // loop_body
      %s23 = ssub.s32 %s18, 1
      %s24 = ssub.s32 %s18, 2
      %s25 = sadd.s32 %s18, 1
      %s26 = ssub.s32 %s18, %s25
      %p27 = scmp.eq.s32.totalorder %s26, 0
      %s29 = sadd.s32 %s28, 1
      %s30 = scalar_select %p27, %s28, %s29
      %p33 = pneg %p27
      %p34 = scmp.eq.s32.totalorder %s18, 1
      %p35 = por %p33, %p34
      %p36 = scmp.ne.s32.totalorder %s28, %s31
      %p37 = scmp.eq.s32.totalorder %s18, 0
      %p38 = por %p36, %p37
      %p39 = scmp.ne.s32.totalorder %s28, %s31
      %p40 = scmp.eq.s32.totalorder %s23, 1
      %p41 = por %p39, %p40
      %p42 = scmp.ne.s32.totalorder %s31, %s32
      %p43 = scmp.eq.s32.totalorder %s23, 0
      %p44 = por %p42, %p43
      %p45 = scmp.ne.s32.totalorder %s31, %s32
      %p46 = scmp.eq.s32.totalorder %s24, 1
      %p47 = por %p45, %p46
      %p49 = scmp.ne.s32.totalorder %s32, %s48
      %p50 = scmp.eq.s32.totalorder %s24, 0
      %p51 = por %p49, %p50
      %s53 = sadd.s32 %s52, 1
      %p56 = scmp.eq.s32.totalorder %s18, 1
      %p57 = scmp.ne.s32.totalorder %s52, %s54
      %p58 = scmp.eq.s32.totalorder %s18, 0
      %p59 = por %p57, %p58
      %p60 = scmp.ne.s32.totalorder %s52, %s54
      %p61 = scmp.eq.s32.totalorder %s23, 1
      %p62 = por %p60, %p61
      %p63 = scmp.ne.s32.totalorder %s54, %s55
      %p64 = scmp.eq.s32.totalorder %s23, 0
      %p65 = por %p63, %p64
      %p66 = scmp.ne.s32.totalorder %s54, %s55
      %p67 = scmp.eq.s32.totalorder %s24, 1
      %p68 = por %p66, %p67
      %p70 = scmp.ne.s32.totalorder %s55, %s69
      %p71 = scmp.eq.s32.totalorder %s24, 0
      %p72 = por %p70, %p71
      %s74 = sadd.s32 %s73, 1
      %p77 = scmp.eq.s32.totalorder %s18, 1
      %p78 = scmp.ne.s32.totalorder %s73, %s75
      %p79 = scmp.eq.s32.totalorder %s18, 0
      %p80 = por %p78, %p79
      %p81 = scmp.ne.s32.totalorder %s73, %s75
      %p82 = scmp.eq.s32.totalorder %s23, 1
      %p83 = por %p81, %p82
      %p84 = scmp.ne.s32.totalorder %s75, %s76
      %p85 = scmp.eq.s32.totalorder %s23, 0
      %p86 = por %p84, %p85
      %p87 = scmp.ne.s32.totalorder %s75, %s76
      %p88 = scmp.eq.s32.totalorder %s24, 1
      %p89 = por %p87, %p88
      %p91 = scmp.ne.s32.totalorder %s76, %s90
      %p92 = scmp.eq.s32.totalorder %s24, 0
      %p93 = por %p91, %p92
      %s95 = sadd.s32 %s94, 1
      %p98 = scmp.eq.s32.totalorder %s18, 1
      %p99 = scmp.ne.s32.totalorder %s94, %s96
      %p100 = scmp.eq.s32.totalorder %s18, 0
      %p101 = por %p99, %p100
      %p102 = scmp.ne.s32.totalorder %s94, %s96
      %p103 = scmp.eq.s32.totalorder %s23, 1
      %p104 = por %p102, %p103
      %p105 = scmp.ne.s32.totalorder %s96, %s97
      %p106 = scmp.eq.s32.totalorder %s23, 0
      %p107 = por %p105, %p106
      %p108 = scmp.ne.s32.totalorder %s96, %s97
      %p109 = scmp.eq.s32.totalorder %s24, 1
      %p110 = por %p108, %p109
      %p112 = scmp.ne.s32.totalorder %s97, %s111
      %p113 = scmp.eq.s32.totalorder %s24, 0
      %p114 = por %p112, %p113
      %s115 = ssub.s32 %s18, %s25
      %p116 = scmp.eq.s32.totalorder %s115, 0
      %s118 = sadd.s32 %s117, 1
      %s119 = scalar_select %p116, %s117, %s118
      %p122 = pneg %p116
      %p123 = scmp.eq.s32.totalorder %s18, 1
      %p124 = por %p122, %p123
      %p125 = scmp.ne.s32.totalorder %s117, %s120
      %p126 = scmp.eq.s32.totalorder %s18, 0
      %p127 = por %p125, %p126
      %p128 = scmp.ne.s32.totalorder %s117, %s120
      %p129 = scmp.eq.s32.totalorder %s23, 1
      %p130 = por %p128, %p129
      %p131 = scmp.ne.s32.totalorder %s120, %s121
      %p132 = scmp.eq.s32.totalorder %s23, 0
      %p133 = por %p131, %p132
      %p134 = scmp.ne.s32.totalorder %s120, %s121
      %p135 = scmp.eq.s32.totalorder %s24, 1
      %p136 = por %p134, %p135
      %p138 = scmp.ne.s32.totalorder %s121, %s137
      %p139 = scmp.eq.s32.totalorder %s24, 0
      %p140 = por %p138, %p139
      %p141 = scmp.le.s32.totalorder 1, %s18
      %p142 = scmp.lt.s32.totalorder %s18, 3
      %p143 = pnand %p141, %p142
      %p144 = pneg %p143
      // Predicated region
      $region9: #{tpu_custom_call.1} parent=5 // pred_check
        _
      $region10: #{tpu_custom_call.1} parent=5 // pred_check_branch
        %146 = sbr.rel (%p143) target = $region12
      $region11: #{tpu_custom_call.1} parent=5 // pred_region
        %s147 = ssub.s32 %s18, 1
        // Predicated region
        $region13: #{tpu_custom_call.1} parent=11 // pred_check
          %p148 = pneg %p65
        $region14: #{tpu_custom_call.1} parent=11 // pred_check_branch
          %150 = sbr.rel (%p148) target = $region16
        $region15: #{tpu_custom_call.1} parent=11 // pred_region
          %s152 = ssub.s32 128, 128
          %153 = vsyncadd [#allocation6], %s152
          %s155 = sshll.u32 [#allocation5], 4
          %s156 = int_to_ptr.vmem [resolvable:$true] %s155
          %158 = dma.hbm_to_vmem [thread:$0]  %s1, 128, %s156, [#allocation6]
        $region16: #{tpu_custom_call.1} parent=11 // pred_fallthru
          _
        // Predicated region
        $region17: #{tpu_custom_call.1} parent=11 // pred_check
          %p159 = pneg %p86
        $region18: #{tpu_custom_call.1} parent=11 // pred_check_branch
          %161 = sbr.rel (%p159) target = $region20
        $region19: #{tpu_custom_call.1} parent=11 // pred_region
          %s163 = ssub.s32 128, 128
          %164 = vsyncadd [#allocation6], %s163
          %s166 = sshll.u32 [#allocation7], 4
          %s167 = int_to_ptr.vmem [resolvable:$true] %s166
          %169 = dma.hbm_to_vmem [thread:$0]  %s2, 128, %s167, [#allocation6]
        $region20: #{tpu_custom_call.1} parent=11 // pred_fallthru
          _
        // Predicated region
        $region21: #{tpu_custom_call.1} parent=11 // pred_check
          %p170 = pneg %p107
        $region22: #{tpu_custom_call.1} parent=11 // pred_check_branch
          %172 = sbr.rel (%p170) target = $region24
        $region23: #{tpu_custom_call.1} parent=11 // pred_region
          %s174 = ssub.s32 512, 512
          %175 = vsyncadd [#allocation9], %s174
          %s176 = sshll.u32 [#allocation8], 4
          %s177 = int_to_ptr.vmem [resolvable:$true] %s176
          %182 = dma.hbm_to_vmem [thread:$0]  %s3, 512, %s177, [#allocation9], 256, 256, 16
        $region24: #{tpu_custom_call.1} parent=11 // pred_fallthru
          _
      $region12: #{tpu_custom_call.1} parent=5 // pred_fallthru
        _
      %p183 = scmp.lt.s32.totalorder %s18, 2
      // Predicated region
      $region25: #{tpu_custom_call.1} parent=5 // pred_check
        %p184 = pneg %p183
      $region26: #{tpu_custom_call.1} parent=5 // pred_check_branch
        %186 = sbr.rel (%p184) target = $region28
      $region27: #{tpu_custom_call.1} parent=5 // pred_region
        // Predicated region
        $region29: #{tpu_custom_call.1} parent=27 // pred_check
          %p187 = pneg %p38
        $region30: #{tpu_custom_call.1} parent=27 // pred_check_branch
          %189 = sbr.rel (%p187) target = $region32
        $region31: #{tpu_custom_call.1} parent=27 // pred_region
          %s190 = sand.u32 %s28, 1
          %s191 = scalar_lea.sflag [#allocation3], %s190
          %s192 = sand.u32 %s28, 1
          %s193 = smul.addr %s192, 8
          %s194 = scalar_lea.vmem [#allocation2], %s193
          %s196 = ssub.s32 128, 128
          %197 = vsyncadd %s191, %s196
          %s198 = smul.addr %s18, 2
          %s199 = smul.addr %s198, 64
          %s200 = scalar_lea.hbm %s0, %s199
          %s202 = sshll.u32 %s194, 4
          %s203 = int_to_ptr.vmem [resolvable:$true] %s202
          %205 = dma.hbm_to_vmem [thread:$0]  %s200, 128, %s203, %s191
        $region32: #{tpu_custom_call.1} parent=27 // pred_fallthru
          _
      $region28: #{tpu_custom_call.1} parent=5 // pred_fallthru
        _
      %p206 = scmp.le.s32.totalorder 1, %s18
      %p207 = scmp.lt.s32.totalorder %s18, 3
      %p208 = pnand %p206, %p207
      %p209 = pneg %p208
      // Predicated region
      $region33: #{tpu_custom_call.1} parent=5 // pred_check
        _
      $region34: #{tpu_custom_call.1} parent=5 // pred_check_branch
        %211 = sbr.rel (%p208) target = $region36
      $region35: #{tpu_custom_call.1} parent=5 // pred_region
        %s212 = ssub.s32 %s18, 1
        %s213 = sand.u32 %s31, 1
        %s214 = scalar_lea.sflag [#allocation3], %s213
        %s215 = sand.u32 %s31, 1
        %s216 = smul.addr %s215, 8
        %s217 = scalar_lea.vmem [#allocation2], %s216
        // Predicated region
        $region37: #{tpu_custom_call.1} parent=35 // pred_check
          %p218 = pneg %p44
        $region38: #{tpu_custom_call.1} parent=35 // pred_check_branch
          %220 = sbr.rel (%p218) target = $region40
        $region39: #{tpu_custom_call.1} parent=35 // pred_region
          %221 = dma.done %s214, 128
        $region40: #{tpu_custom_call.1} parent=35 // pred_fallthru
          _
        // Predicated region
        $region41: #{tpu_custom_call.1} parent=35 // pred_check
          %p222 = pneg %p65
        $region42: #{tpu_custom_call.1} parent=35 // pred_check_branch
          %224 = sbr.rel (%p222) target = $region44
        $region43: #{tpu_custom_call.1} parent=35 // pred_region
          %225 = dma.done [#allocation6], 128
        $region44: #{tpu_custom_call.1} parent=35 // pred_fallthru
          _
        // Predicated region
        $region45: #{tpu_custom_call.1} parent=35 // pred_check
          %p226 = pneg %p86
        $region46: #{tpu_custom_call.1} parent=35 // pred_check_branch
          %228 = sbr.rel (%p226) target = $region48
        $region47: #{tpu_custom_call.1} parent=35 // pred_region
          %229 = dma.done [#allocation6], 128
        $region48: #{tpu_custom_call.1} parent=35 // pred_fallthru
          _
        // Predicated region
        $region49: #{tpu_custom_call.1} parent=35 // pred_check
          %p230 = pneg %p107
        $region50: #{tpu_custom_call.1} parent=35 // pred_check_branch
          %232 = sbr.rel (%p230) target = $region52
        $region51: #{tpu_custom_call.1} parent=35 // pred_region
          %233 = dma.done [#allocation9], 512
        $region52: #{tpu_custom_call.1} parent=35 // pred_fallthru
          _
        %s234 = sand.u32 %s31, 1
        %s235 = scalar_lea.sflag [#allocation3], %s234
        %s236 = sand.u32 %s31, 1
        %s237 = smul.addr %s236, 8
        %s238 = scalar_lea.vmem [#allocation2], %s237
        %p239 = pneg %p44
        %p240 = pneg %p41
        %p241 = pneg %p65
        %p242 = pneg %p62
        %p243 = pneg %p86
        %p244 = pneg %p83
        %p245 = pneg %p107
        %p246 = pneg %p104
        %p247 = pneg %p133
        %p248 = pneg %p130
        %s249 = sand.u32 %s120, 1
        %s250 = scalar_lea.sflag [#allocation4], %s249
        %s251 = sand.u32 %s120, 1
        %s252 = smul.addr %s251, 16
        %s253 = scalar_lea.vmem [#allocation10], %s252
        %v254 = vld [vmem:[#allocation8] sm:$0xff]
        %v255 = vld [vmem:[#allocation8 + $0x8] sm:$0xff]
        %v256 = vld [vmem:[#allocation8 + $0x10] sm:$0x1]
        %v257 = vld [vmem:[#allocation8 + $0x18] sm:$0x1]
        %v258 = vld [vmem:[%s217] sm:$0xff]
        %v260 = vcombine.high %v258, %v258
        %262 = vrot.lane.b32.xlu0 %v258, 17
        %v263 = vpop.permute.xlu0 %262
        %264 = vrot.lane.b32.xlu0 %v260, 17
        %v265 = vpop.permute.xlu0 %264
        %v266 = vlaneseq
        %v267 = vand.u32 %v266, 127
        %vm268 = vcmp.lt.s32.totalorder %v267, 17
        %v269 = vsel %vm268, %v263, %v265
        %v270 = vsel %vm268, %v265, %v263
        %v271 = vlaneseq
        %v272 = vshrl.u32 %v271, 7
        %v273 = vsub.s32 0, %v272
        %v274 = vrot.slane %v254, %v273
        %v275 = vlaneseq
        %v276 = vshrl.u32 %v275, 7
        %v277 = vsub.s32 0, %v276
        %v278 = vrot.slane %v255, %v277
        %v279 = vmul.f32 %v270, %v274
        %v280 = vmul.f32 %v269, %v278
        %281 = vrot.lane.b32.xlu0 %v258, 16
        %v282 = vpop.permute.xlu0 %281
        %283 = vrot.lane.b32.xlu0 %v260, 16
        %v284 = vpop.permute.xlu0 %283
        %vm285 = vcmp.lt.s32.totalorder %v267, 16
        %v286 = vsel %vm285, %v282, %v284
        %v287 = vsel %vm285, %v284, %v282
        %v288 = vlaneseq
        %v289 = vshrl.u32 %v288, 7
        %v290 = vsub.s32 1, %v289
        %v291 = vrot.slane %v254, %v290
        %v292 = vlaneseq
        %v293 = vshrl.u32 %v292, 7
        %v294 = vsub.s32 1, %v293
        %v295 = vrot.slane %v255, %v294
        %v296 = vmul.f32 %v287, %v291
        %v297 = vmul.f32 %v286, %v295
        %298 = vrot.lane.b32.xlu0 %v258, 15
        %v299 = vpop.permute.xlu0 %298
        %300 = vrot.lane.b32.xlu0 %v260, 15
        %v301 = vpop.permute.xlu0 %300
        %vm302 = vcmp.lt.s32.totalorder %v267, 15
        %v303 = vsel %vm302, %v299, %v301
        %v304 = vsel %vm302, %v301, %v299
        %v305 = vlaneseq
        %v306 = vshrl.u32 %v305, 7
        %v307 = vsub.s32 2, %v306
        %v308 = vrot.slane %v254, %v307
        %v309 = vlaneseq
        %v310 = vshrl.u32 %v309, 7
        %v311 = vsub.s32 2, %v310
        %v312 = vrot.slane %v255, %v311
        %v313 = vmul.f32 %v304, %v308
        %v314 = vmul.f32 %v303, %v312
        %315 = vrot.lane.b32.xlu0 %v258, 1
        %v316 = vpop.permute.xlu0 %315
        %317 = vrot.lane.b32.xlu0 %v260, 1
        %v318 = vpop.permute.xlu0 %317
        %vm319 = vcmp.lt.s32.totalorder %v267, 1
        %v320 = vsel %vm319, %v316, %v318
        %v321 = vsel %vm319, %v318, %v316
        %v322 = vlaneseq
        %v323 = vshrl.u32 %v322, 7
        %v324 = vsub.s32 3, %v323
        %v325 = vrot.slane %v254, %v324
        %v326 = vlaneseq
        %v327 = vshrl.u32 %v326, 7
        %v328 = vsub.s32 3, %v327
        %v329 = vrot.slane %v255, %v328
        %v330 = vmul.f32 %v321, %v325
        %v331 = vmul.f32 %v320, %v329
        %v332 = vlaneseq
        %v333 = vshrl.u32 %v332, 7
        %v334 = vsub.s32 4, %v333
        %v335 = vrot.slane %v254, %v334
        %v336 = vlaneseq
        %v337 = vshrl.u32 %v336, 7
        %v338 = vsub.s32 4, %v337
        %v339 = vrot.slane %v255, %v338
        %v342 = vcombine.low %v335, %v339
        %v344 = vmul.f32 %v258, %v342
        %345 = vrot.lane.b32.xlu0 %v258, 127
        %v346 = vpop.permute.xlu0 %345
        %347 = vrot.lane.b32.xlu0 %v260, 127
        %v348 = vpop.permute.xlu0 %347
        %vm349 = vcmp.lt.s32.totalorder %v267, 127
        %v350 = vsel %vm349, %v346, %v348
        %v351 = vsel %vm349, %v348, %v346
        %v352 = vlaneseq
        %v353 = vshrl.u32 %v352, 7
        %v354 = vsub.s32 5, %v353
        %v355 = vrot.slane %v254, %v354
        %v356 = vlaneseq
        %v357 = vshrl.u32 %v356, 7
        %v358 = vsub.s32 5, %v357
        %v359 = vrot.slane %v255, %v358
        %v360 = vmul.f32 %v350, %v355
        %v361 = vmul.f32 %v351, %v359
        %362 = vrot.lane.b32.xlu0 %v258, 113
        %v363 = vpop.permute.xlu0 %362
        %364 = vrot.lane.b32.xlu0 %v260, 113
        %v365 = vpop.permute.xlu0 %364
        %vm366 = vcmp.lt.s32.totalorder %v267, 113
        %v367 = vsel %vm366, %v363, %v365
        %v368 = vsel %vm366, %v365, %v363
        %v369 = vlaneseq
        %v370 = vshrl.u32 %v369, 7
        %v371 = vsub.s32 6, %v370
        %v372 = vrot.slane %v254, %v371
        %v373 = vlaneseq
        %v374 = vshrl.u32 %v373, 7
        %v375 = vsub.s32 6, %v374
        %v376 = vrot.slane %v255, %v375
        %v377 = vmul.f32 %v367, %v372
        %v378 = vmul.f32 %v368, %v376
        %379 = vrot.lane.b32.xlu0 %v258, 112
        %v380 = vpop.permute.xlu0 %379
        %381 = vrot.lane.b32.xlu0 %v260, 112
        %v382 = vpop.permute.xlu0 %381
        %vm383 = vcmp.lt.s32.totalorder %v267, 112
        %v384 = vsel %vm383, %v380, %v382
        %v385 = vsel %vm383, %v382, %v380
        %v386 = vlaneseq
        %v387 = vshrl.u32 %v386, 7
        %v388 = vsub.s32 7, %v387
        %v389 = vrot.slane %v254, %v388
        %v390 = vlaneseq
        %v391 = vshrl.u32 %v390, 7
        %v392 = vsub.s32 7, %v391
        %v393 = vrot.slane %v255, %v392
        %v394 = vmul.f32 %v384, %v389
        %v395 = vmul.f32 %v385, %v393
        %396 = vrot.lane.b32.xlu0 %v258, 111
        %v397 = vpop.permute.xlu0 %396
        %398 = vrot.lane.b32.xlu0 %v260, 111
        %v399 = vpop.permute.xlu0 %398
        %vm400 = vcmp.lt.s32.totalorder %v267, 111
        %v401 = vsel %vm400, %v397, %v399
        %v402 = vsel %vm400, %v399, %v397
        %v403 = vlaneseq
        %v404 = vshrl.u32 %v403, 7
        %v405 = vsub.s32 0, %v404
        %v406 = vrot.slane %v256, %v405
        %v407 = vlaneseq
        %v408 = vshrl.u32 %v407, 7
        %v409 = vsub.s32 0, %v408
        %v410 = vrot.slane %v257, %v409
        %v411 = vmul.f32 %v401, %v406
        %v412 = vmul.f32 %v402, %v410
        %v415 = vrot.slane %v296, 4
        %v416 = vrot.slane %v297, 4
        %v421 = vrot.slane %v330, 4
        %v422 = vrot.slane %v331, 4
        %v426 = vcombine.high %v344, %v344
        %v430 = vrot.slane %v360, 4
        %v431 = vrot.slane %v361, 4
        %v436 = vrot.slane %v394, 4
        %v437 = vrot.slane %v395, 4
        %vm440 = vcmask 1043456
        %v441 = vsel %vm440, %v279, %v415
        %v442 = vsel %vm440, %v280, %v416
        %v443 = vsel %vm440, %v313, %v421
        %v444 = vsel %vm440, %v314, %v422
        %v445 = vsel %vm440, %v344, %v430
        %v446 = vsel %vm440, %v426, %v431
        %v447 = vsel %vm440, %v377, %v436
        %v448 = vsel %vm440, %v378, %v437
        %v449 = vsel %vm440, %v411, 1.0
        %v450 = vsel %vm440, %v412, 1.0
        %v451 = vld [vmem:[#allocation5] sm:$0xff]
        %vm452 = vcmask 302080
        %v454 = vsel %vm452, %v451, 0
        %vm456 = vcmask 1044480
        %v458 = vsel %vm456, %v449, 0
        %v461 = vsel %vm456, %v450, 0
        %463 = vmatprep.subr.mxu0 %v442
        %464 = vmatpush1.msra.mxu0 %v441
        %465 = vmatprep.subr.mxu0 %v444
        %466 = vmatpush1.msra.mxu0 %v443
        %467 = vmatprep.subr.mxu0 %v446
        %468 = vmatpush1.msra.mxu0 %v445
        %469 = vmatprep.subr.mxu0 %v448
        %470 = vmatpush1.msra.mxu0 %v447
        %471 = vmatprep.subr.mxu0 %v461
        %472 = vmatpush1.msra.mxu0 %v458
        %473 = vmatprep.subr.mxu0 0.0
        %474 = vmatpush1.msra.mxu0 0.0
        %475 = vmatprep.subr.mxu0 0.0
        %476 = vmatpush1.msra.mxu0 0.0
        %477 = vmatprep.subr.mxu0 0.0
        %478 = vmatpush1.msra.mxu0 0.0
        %479 = vmatprep.subr.mxu0 0.0
        %480 = vmatpush1.msra.mxu0 0.0
        %481 = vmatprep.subr.mxu0 0.0
        %482 = vmatpush1.msra.mxu0 0.0
        %483 = vmatprep.subr.mxu0 0.0
        %484 = vmatpush1.msra.mxu0 0.0
        %485 = vmatprep.subr.mxu0 0.0
        %486 = vmatpush1.msra.mxu0 0.0
        %487 = vmatprep.subr.mxu0 0.0
        %488 = vmatpush1.msra.mxu0 0.0
        %489 = vmatprep.subr.mxu0 0.0
        %490 = vmatpush1.msra.mxu0 0.0
        %491 = vmatprep.subr.mxu0 0.0
        %492 = vmatpush1.msra.mxu0 0.0
        %493 = vmatprep.subr.mxu0 0.0
        %494 = vmatpush1.msra.mxu0 0.0
        %495 = vmatprep.subr.mxu0 0.0
        %496 = vmatpush1.msra.mxu0 0.0
        %497 = vmatprep.subr.mxu0 0.0
        %498 = vmatpush1.msra.mxu0 0.0
        %499 = vmatprep.subr.mxu0 0.0
        %500 = vmatpush1.msra.mxu0 0.0
        %501 = vmatprep.subr.mxu0 0.0
        %502 = vmatpush1.msra.mxu0 0.0
        %503 = vmatprep.subr.mxu0 0.0
        %504 = vmatpush1.msra.mxu0 0.0
        %505 = vmatprep.subr.mxu0 0.0
        %506 = vmatpush1.msra.mxu0 0.0
        %507 = vmatprep.subr.mxu0 0.0
        %508 = vmatpush1.msra.mxu0 0.0
        %509 = vmatprep.subr.mxu0 0.0
        %510 = vmatpush1.msra.mxu0 0.0
        %511 = vmatprep.subr.mxu0 0.0
        %512 = vmatpush1.msra.mxu0 0.0
        %513 = vmatprep.subr.mxu0 0.0
        %514 = vmatpush1.msra.mxu0 0.0
        %515 = vmatprep.subr.mxu0 0.0
        %516 = vmatpush1.msra.mxu0 0.0
        %517 = vmatprep.subr.mxu0 0.0
        %518 = vmatpush1.msra.mxu0 0.0
        %519 = vmatprep.subr.mxu0 0.0
        %520 = vmatpush1.msra.mxu0 0.0
        %521 = vmatprep.subr.mxu0 0.0
        %522 = vmatpush1.msra.mxu0 0.0
        %523 = vmatprep.subr.mxu0 0.0
        %524 = vmatpush1.msra.mxu0 0.0
        %525 = vmatprep.subr.mxu0 0.0
        %526 = vmatpush1.msra.mxu0 0.0
        %527 = vmatprep.mubr.f32.mxu0 0.0
        %528 = vmatmul.mubr.f32.gmra.mrb[0].mxu0 %v454
        %v529 = vpop.f32.mrb[0].mxu0
        %v530 = vadd.f32 0.0, %v529
        %v531 = vpop.f32.mrb[0].mxu0
        %v532 = vadd.f32 0.0, %v531
        %533 = vdwg.mxu0
        %v534 = vmul.f32 %v530, 0.2
        %v535 = vmul.f32 %v532, 0.2
        %v536 = vmax.f32 %v530, %v534
        %v537 = vmax.f32 %v532, %v535
        %538 = vrot.lane.b32.xlu0 %v536, 17
        %v539 = vpop.permute.xlu0 %538
        %540 = vrot.lane.b32.xlu0 %v537, 17
        %v541 = vpop.permute.xlu0 %540
        %v542 = vsel %vm268, %v539, %v541
        %v543 = vsel %vm268, %v541, %v539
        %v544 = vmul.f32 %v543, %v274
        %v545 = vmul.f32 %v542, %v278
        %546 = vrot.lane.b32.xlu0 %v536, 16
        %v547 = vpop.permute.xlu0 %546
        %548 = vrot.lane.b32.xlu0 %v537, 16
        %v549 = vpop.permute.xlu0 %548
        %v550 = vsel %vm285, %v547, %v549
        %v551 = vsel %vm285, %v549, %v547
        %v552 = vmul.f32 %v551, %v291
        %v553 = vmul.f32 %v550, %v295
        %554 = vrot.lane.b32.xlu0 %v536, 15
        %v555 = vpop.permute.xlu0 %554
        %556 = vrot.lane.b32.xlu0 %v537, 15
        %v557 = vpop.permute.xlu0 %556
        %v558 = vsel %vm302, %v555, %v557
        %v559 = vsel %vm302, %v557, %v555
        %v560 = vmul.f32 %v559, %v308
        %v561 = vmul.f32 %v558, %v312
        %562 = vrot.lane.b32.xlu0 %v536, 1
        %v563 = vpop.permute.xlu0 %562
        %564 = vrot.lane.b32.xlu0 %v537, 1
        %v565 = vpop.permute.xlu0 %564
        %v566 = vsel %vm319, %v563, %v565
        %v567 = vsel %vm319, %v565, %v563
        %v568 = vmul.f32 %v567, %v325
        %v569 = vmul.f32 %v566, %v329
        %v570 = vmul.f32 %v536, %v335
        %v571 = vmul.f32 %v537, %v339
        %572 = vrot.lane.b32.xlu0 %v536, 127
        %v573 = vpop.permute.xlu0 %572
        %574 = vrot.lane.b32.xlu0 %v537, 127
        %v575 = vpop.permute.xlu0 %574
        %v576 = vsel %vm349, %v573, %v575
        %v577 = vsel %vm349, %v575, %v573
        %v578 = vmul.f32 %v576, %v355
        %v579 = vmul.f32 %v577, %v359
        %580 = vrot.lane.b32.xlu0 %v536, 113
        %v581 = vpop.permute.xlu0 %580
        %582 = vrot.lane.b32.xlu0 %v537, 113
        %v583 = vpop.permute.xlu0 %582
        %v584 = vsel %vm366, %v581, %v583
        %v585 = vsel %vm366, %v583, %v581
        %v586 = vmul.f32 %v584, %v372
        %v587 = vmul.f32 %v585, %v376
        %588 = vrot.lane.b32.xlu0 %v536, 112
        %v589 = vpop.permute.xlu0 %588
        %590 = vrot.lane.b32.xlu0 %v537, 112
        %v591 = vpop.permute.xlu0 %590
        %v592 = vsel %vm383, %v589, %v591
        %v593 = vsel %vm383, %v591, %v589
        %v594 = vmul.f32 %v592, %v389
        %v595 = vmul.f32 %v593, %v393
        %596 = vrot.lane.b32.xlu0 %v536, 111
        %v597 = vpop.permute.xlu0 %596
        %598 = vrot.lane.b32.xlu0 %v537, 111
        %v599 = vpop.permute.xlu0 %598
        %v600 = vsel %vm400, %v597, %v599
        %v601 = vsel %vm400, %v599, %v597
        %v602 = vmul.f32 %v600, %v406
        %v603 = vmul.f32 %v601, %v410
        %v604 = vld [vmem:[#allocation7] sm:$0xff]
        %vm605 = vcmask 596992
        %v607 = vsel %vm605, %v604, 0
        %vm609 = vcmask 1040384
        %v611 = vsel %vm609, 1.0, 0
        %613 = vmatprep.subr.mxu0 %v545
        %614 = vmatpush1.msra.mxu0 %v544
        %615 = vmatprep.subr.mxu0 %v553
        %616 = vmatpush1.msra.mxu0 %v552
        %617 = vmatprep.subr.mxu0 %v561
        %618 = vmatpush1.msra.mxu0 %v560
        %619 = vmatprep.subr.mxu0 %v569
        %620 = vmatpush1.msra.mxu0 %v568
        %621 = vmatprep.subr.mxu0 %v571
        %622 = vmatpush1.msra.mxu0 %v570
        %623 = vmatprep.subr.mxu0 %v579
        %624 = vmatpush1.msra.mxu0 %v578
        %625 = vmatprep.subr.mxu0 %v587
        %626 = vmatpush1.msra.mxu0 %v586
        %627 = vmatprep.subr.mxu0 %v595
        %628 = vmatpush1.msra.mxu0 %v594
        %629 = vmatprep.subr.mxu0 %v603
        %630 = vmatpush1.msra.mxu0 %v602
        %631 = vmatprep.subr.mxu0 %v611
        %632 = vmatpush1.msra.mxu0 %v611
        %633 = vmatprep.subr.mxu0 0.0
        %634 = vmatpush1.msra.mxu0 0.0
        %635 = vmatprep.subr.mxu0 0.0
        %636 = vmatpush1.msra.mxu0 0.0
        %637 = vmatprep.subr.mxu0 0.0
        %638 = vmatpush1.msra.mxu0 0.0
        %639 = vmatprep.subr.mxu0 0.0
        %640 = vmatpush1.msra.mxu0 0.0
        %641 = vmatprep.subr.mxu0 0.0
        %642 = vmatpush1.msra.mxu0 0.0
        %643 = vmatprep.subr.mxu0 0.0
        %644 = vmatpush1.msra.mxu0 0.0
        %645 = vmatprep.subr.mxu0 0.0
        %646 = vmatpush1.msra.mxu0 0.0
        %647 = vmatprep.subr.mxu0 0.0
        %648 = vmatpush1.msra.mxu0 0.0
        %649 = vmatprep.subr.mxu0 0.0
        %650 = vmatpush1.msra.mxu0 0.0
        %651 = vmatprep.subr.mxu0 0.0
        %652 = vmatpush1.msra.mxu0 0.0
        %653 = vmatprep.subr.mxu0 0.0
        %654 = vmatpush1.msra.mxu0 0.0
        %655 = vmatprep.subr.mxu0 0.0
        %656 = vmatpush1.msra.mxu0 0.0
        %657 = vmatprep.subr.mxu0 0.0
        %658 = vmatpush1.msra.mxu0 0.0
        %659 = vmatprep.subr.mxu0 0.0
        %660 = vmatpush1.msra.mxu0 0.0
        %661 = vmatprep.subr.mxu0 0.0
        %662 = vmatpush1.msra.mxu0 0.0
        %663 = vmatprep.subr.mxu0 0.0
        %664 = vmatpush1.msra.mxu0 0.0
        %665 = vmatprep.subr.mxu0 0.0
        %666 = vmatpush1.msra.mxu0 0.0
        %667 = vmatprep.subr.mxu0 0.0
        %668 = vmatpush1.msra.mxu0 0.0
        %669 = vmatprep.subr.mxu0 0.0
        %670 = vmatpush1.msra.mxu0 0.0
        %671 = vmatprep.subr.mxu0 0.0
        %672 = vmatpush1.msra.mxu0 0.0
        %673 = vmatprep.subr.mxu0 0.0
        %674 = vmatpush1.msra.mxu0 0.0
        %675 = vmatprep.subr.mxu0 0.0
        %676 = vmatpush1.msra.mxu0 0.0
        %677 = vmatprep.mubr.f32.mxu0 0.0
        %678 = vmatmul.mubr.f32.gmra.mrb[0].mxu0 %v607
        %v679 = vpop.f32.mrb[0].mxu0
        %v680 = vadd.f32 0.0, %v679
        %v681 = vpop.f32.mrb[0].mxu0
        %v682 = vadd.f32 0.0, %v681
        %683 = vdwg.mxu0
        %v684 = vmul.f32 %v680, 0.2
        %v685 = vmul.f32 %v682, 0.2
        %v686 = vmax.f32 %v680, %v684
        %v687 = vmax.f32 %v682, %v685
        %688 = vst [vmem:[%s253] sm:$0xff] %v686
        %689 = vst [vmem:[%s253 + $0x8] sm:$0xff] %v687
        %s690 = sand.u32 %s120, 1
        %s691 = scalar_lea.sflag [#allocation4], %s690
        %s692 = sand.u32 %s120, 1
        %s693 = smul.addr %s692, 16
        %s694 = scalar_lea.vmem [#allocation10], %s693
        // Predicated region
        $region53: #{tpu_custom_call.1} parent=35 // pred_check
          %p695 = pneg %p130
        $region54: #{tpu_custom_call.1} parent=35 // pred_check_branch
          %697 = sbr.rel (%p695) target = $region56
        $region55: #{tpu_custom_call.1} parent=35 // pred_region
          %s699 = ssub.s32 256, 256
          %700 = vsyncadd %s691, %s699
          %s701 = smul.addr %s23, 2
          %s702 = smul.addr %s701, 128
          %s703 = scalar_lea.hbm %s4, %s702
          %s705 = sshll.u32 %s694, 4
          %s706 = int_to_ptr.vmem [resolvable:$true] %s705
          %708 = dma.vmem_to_hbm [thread:$0]  %s706, 256, %s703, %s691
        $region56: #{tpu_custom_call.1} parent=35 // pred_fallthru
          _
      $region36: #{tpu_custom_call.1} parent=5 // pred_fallthru
        _
      %p709 = scmp.le.s32.totalorder 2, %s18
      // Predicated region
      $region57: #{tpu_custom_call.1} parent=5 // pred_check
        %p710 = pneg %p709
      $region58: #{tpu_custom_call.1} parent=5 // pred_check_branch
        %712 = sbr.rel (%p710) target = $region60
      $region59: #{tpu_custom_call.1} parent=5 // pred_region
        %s713 = ssub.s32 %s18, 2
        // Predicated region
        $region61: #{tpu_custom_call.1} parent=59 // pred_check
          %p714 = pneg %p136
        $region62: #{tpu_custom_call.1} parent=59 // pred_check_branch
          %716 = sbr.rel (%p714) target = $region64
        $region63: #{tpu_custom_call.1} parent=59 // pred_region
          %s717 = sand.u32 %s121, 1
          %s718 = scalar_lea.sflag [#allocation4], %s717
          %s719 = sand.u32 %s121, 1
          %s720 = smul.addr %s719, 16
          %s721 = scalar_lea.vmem [#allocation10], %s720
          %722 = dma.done %s718, 256
        $region64: #{tpu_custom_call.1} parent=59 // pred_fallthru
          _
      $region60: #{tpu_custom_call.1} parent=5 // pred_fallthru
        _
    $region6: #{tpu_custom_call.1} parent=1 // loop_footer
      %s22 = sadd.s32 1, %s18
    $region7: #{tpu_custom_call.1} parent=1 // loop_footer_branch
      %17 = sbr.rel target = $region3
    $region8: #{tpu_custom_call.1} parent=1 // loop_exit
      _
    %723 = vsyncpa [#allocation3], 1
    %s724 = scalar_lea.sflag [#allocation3], 1
    %725 = vsyncpa %s724, 1
    %726 = vsyncpa [#allocation6], 1
    %727 = vsyncpa [#allocation9], 1
    %728 = vsyncpa [#allocation4], 1
    %s729 = scalar_lea.sflag [#allocation4], 1
    %730 = vsyncpa %s729, 1

</llo_original>
